<compile_context>
chip_gen: v5e
topology: v5e:2x2
jax: 0.10.0
libtpu: 0.0.40
codegen_flags: <defaults>
</compile_context>

<pallas_src>
import math

import jax
import jax.numpy as jnp
from jax import lax
from jax.experimental import pallas as pl
from jax.experimental.pallas import tpu as pltpu


def _round_up(x, m):
    return ((x + m - 1) // m) * m


def _make_kernel(Nb, Cp, Wp, HWo):
    """Per-grid-step kernel: Nb images, static channel / spatial sizes."""
    taps = [(ky, kx) for ky in range(3) for kx in range(3)]

    def kernel(x_ref, w_ref, b_ref, o_ref, slab_ref):
        # x_ref   : (Nb, Cp, Lpad)    padded images, spatial flattened on lanes
        # w_ref   : (Cop, 9*Cp)       fused depthwise*pointwise weight (zero-padded)
        # b_ref   : (Cop, 1)          fused bias (f32)
        # o_ref   : (Nb, Cop, HWo)    lane-dense output (cols >= W per row are garbage)
        # slab_ref: (9*Cp, Nb*HWo)    VMEM im2col scratch
        for nb in range(Nb):
            x = x_ref[nb]                                   # (Cp, Lpad)
            for t, (ky, kx) in enumerate(taps):
                off = ky * Wp + kx
                # Full-sublane (Cp rows), lane-dense (HWo cols, 128-aligned
                # destination) store; the lane shift of the source is the only
                # non-trivial work per tap.
                slab_ref[t * Cp:(t + 1) * Cp, nb * HWo:(nb + 1) * HWo] = \
                    x[:, off:off + HWo]

        # Single fused GEMM on the MXU: (Cop, 9*Cp) x (9*Cp, Nb*HWo).
        out = jnp.dot(w_ref[...], slab_ref[...],
                      preferred_element_type=jnp.float32)
        out = out + b_ref[...]
        for nb in range(Nb):
            o_ref[nb] = out[:, nb * HWo:(nb + 1) * HWo].astype(o_ref.dtype)

    return kernel


def depthwise_separable_conv_pallas(x_nchw, dw_w, dw_b, pw_w, pw_b,
                                    use_bf16=False):
    """x_nchw: (N, C_in, H, W) f32.  Returns (N, C_out, H, W) f32.

    dw_w: (C_in*1, 1, 3, 3), dw_b: (C_in,), pw_w: (C_out, C_in, 1, 1),
    pw_b: (C_out,) — torch Conv2d layouts.  use_bf16=True casts inputs and
    weights to bf16 (f32 accumulate); faster on v6e/v7x but loosens numerics.
    """
    N, C_in, H, W = x_nchw.shape
    C_out = pw_w.shape[0]
    assert dw_w.shape[0] == C_in and dw_w.shape[1] == 1, \
        "fused depthwise+pointwise requires kernels_per_layer == 1"

    cdt = jnp.bfloat16 if use_bf16 else jnp.float32
    itemsize = jnp.dtype(cdt).itemsize
    sub = 16 if cdt == jnp.bfloat16 else 8
    Cp = _round_up(C_in, sub)              # sublane-aligned input channels
    Cop = _round_up(C_out, 8)              # sublane-aligned (f32) output channels

    Wp = W + 2                             # minimal padded width (1 left + 1 right)
    HWo = _round_up(H * Wp, 128)           # lane-dense slab / output width
    L_need = 2 * Wp + 2 + HWo              # max tap offset + slab width
    Rtot = -(-L_need // Wp)                # total padded rows (>= H + 2)
    Lpad = Rtot * Wp

    # Nb images per grid step: keep the grid even (>= 2) when N >= 2 so both
    # v7x TensorCores get work, and grow Nb within a small VMEM budget to
    # amortize per-step pipeline overhead on single-TC v5e/v6e.
    slab_per_img = 9 * Cp * HWo * itemsize
    nb_cap = max(1, (8 * 1024 * 1024) // max(slab_per_img, 1))
    Nb = 1 if N <= 1 else max(1, min(nb_cap, (N + 1) // 2))
    n_steps = -(-N // Nb)
    Npad = n_steps * Nb

    # ---- single pad + reshape: batch->Npad, chan->Cp, 1 top row + bottom
    # slack rows, 1 left col + right col(s).  Stays NCHW; no transposes. ----
    x_pad = jnp.pad(
        x_nchw.astype(cdt),
        ((0, Npad - N), (0, Cp - C_in), (1, Rtot - H - 1), (1, Wp - W - 1)))
    x_flat = x_pad.reshape(Npad, Cp, Lpad)

    # ---- fold the depthwise taps into the pointwise weight (exact, kpl==1) ----
    #   w_eff[o, t*Cp + c] = dw[c, ky, kx] * pw[o, c]   (t = ky*3 + kx, c < C_in)
    #   b_eff               = pw @ dw_b + pw_b
    dwk = dw_w[:, 0, :, :].reshape(C_in, 9)                    # [c, t]
    pwm = pw_w[:, :, 0, 0]                                     # (C_out, C_in)
    w_eff = jnp.zeros((Cop, 9, Cp), jnp.float32)
    w_eff = w_eff.at[:C_out, :, :C_in].set(
        pwm[:, None, :] * jnp.transpose(dwk)[None, :, :])
    w_eff = w_eff.reshape(Cop, 9 * Cp).astype(cdt)
    b_eff = jnp.zeros((Cop, 1), jnp.float32)
    b_eff = b_eff.at[:C_out, 0].set(pwm @ dw_b + pw_b)

    kernel = _make_kernel(Nb, Cp, Wp, HWo)

    # Actual VMEM footprint (double-buffered blocks + slab) -> tight-but-safe limit.
    in_bytes = Nb * Cp * Lpad * itemsize
    w_bytes = Cop * 9 * Cp * itemsize
    out_bytes = Nb * Cop * HWo * 4
    footprint = 2 * (in_bytes + w_bytes + Cop * 4 + out_bytes) + Nb * slab_per_img
    vmem_limit = int(min(max(16 * 1024 * 1024, 2 * footprint),
                         96 * 1024 * 1024))

    cost = pl.CostEstimate(
        flops=2 * Npad * Cop * 9 * Cp * HWo,
        transcendentals=0,
        bytes_accessed=(Npad * Cp * Lpad * itemsize
                        + Cop * 9 * Cp * itemsize + Cop * 4
                        + Npad * Cop * HWo * 4),
    )

    out_flat = pl.pallas_call(
        kernel,
        out_shape=jax.ShapeDtypeStruct((Npad, Cop, HWo), jnp.float32),
        grid_spec=pltpu.PrefetchScalarGridSpec(
            num_scalar_prefetch=0,
            grid=(n_steps,),
            in_specs=[
                pl.BlockSpec((Nb, Cp, Lpad), lambda n: (n, 0, 0)),
                pl.BlockSpec((Cop, 9 * Cp), lambda n: (0, 0)),
                pl.BlockSpec((Cop, 1), lambda n: (0, 0)),
            ],
            out_specs=pl.BlockSpec((Nb, Cop, HWo), lambda n: (n, 0, 0)),
            scratch_shapes=[pltpu.VMEM((9 * Cp, Nb * HWo), cdt)],
        ),
        compiler_params=pltpu.CompilerParams(
            dimension_semantics=("parallel",),
            vmem_limit_bytes=vmem_limit,
        ),
        cost_estimate=cost,
    )(x_flat, w_eff, b_eff)

    # Valid data: batch [:N], channels [:C_out]; spatial column p = y*Wp + x
    # with x < W (columns x >= W are the flattened-row im2col garbage).
    # TODO(synk): skip this slice if the consumer can take a strided
    # (N, C_out, H, Wp) view.
    out = out_flat[:N, :C_out, :H * Wp].reshape(N, C_out, H, Wp)[:, :, :, :W]
    return out


def _reference(x_nchw, dw_w, dw_b, pw_w, pw_b):
    """Pure-JAX reference (matches torch Conv2d semantics)."""
    C_in = x_nchw.shape[1]
    dn = lax.conv_dimension_numbers(x_nchw.shape, dw_w.shape,
                                    ("NCHW", "OIHW", "NCHW"))
    dw = lax.conv_general_dilated(x_nchw, dw_w, (1, 1), ((1, 1), (1, 1)),
                                  dimension_numbers=dn,
                                  feature_group_count=C_in)
    dw = dw + dw_b[None, :, None, None]
    dn2 = lax.conv_dimension_numbers(dw.shape, pw_w.shape,
                                     ("NCHW", "OIHW", "NCHW"))
    pw = lax.conv_general_dilated(dw, pw_w, (1, 1), ((0, 0), (0, 0)),
                                  dimension_numbers=dn2)
    return pw + pw_b[None, :, None, None]


if __name__ == "__main__":
    N, C_in, C_out, H, W = 2, 4, 8, 16, 16
    key = jax.random.PRNGKey(0)
    kx, k1, k2, k3, k4 = jax.random.split(key, 5)

    x = jax.random.normal(kx, (N, C_in, H, W), jnp.float32)

    # Deterministic parameter init (torch-like uniform bounds).
    fan_dw = 1 * 3 * 3
    dw_w = jax.random.uniform(k1, (C_in * 1, 1, 3, 3), jnp.float32,
                              -1.0 / fan_dw ** 0.5, 1.0 / fan_dw ** 0.5)
    dw_b = jax.random.uniform(k2, (C_in * 1,), jnp.float32,
                              -1.0 / fan_dw ** 0.5, 1.0 / fan_dw ** 0.5)
    fan_pw = C_in * 1 * 1
    pw_w = jax.random.uniform(k3, (C_out, C_in, 1, 1), jnp.float32,
                              -1.0 / fan_pw ** 0.5, 1.0 / fan_pw ** 0.5)
    pw_b = jax.random.uniform(k4, (C_out,), jnp.float32,
                              -1.0 / fan_pw ** 0.5, 1.0 / fan_pw ** 0.5)

    out = depthwise_separable_conv_pallas(x, dw_w, dw_b, pw_w, pw_b)
    out = jax.block_until_ready(out)

    ref = _reference(x, dw_w, dw_b, pw_w, pw_b)
    assert out.shape == (N, C_out, H, W)
    assert jnp.allclose(out, ref, atol=1e-4, rtol=1e-4), "mismatch vs reference"

    print("KERNEL_OK")
</pallas_src>

<mosaic_0001>
module attributes {stable_mosaic.version = 11 : i64} {
  func.func @kernel(%arg0: i32, %arg1: memref<1x8x432xf32, #tpu.memory_space<vmem>>, %arg2: memref<8x72xf32, #tpu.memory_space<vmem>>, %arg3: memref<8x1xf32, #tpu.memory_space<vmem>>, %arg4: memref<1x8x384xf32, #tpu.memory_space<vmem>>, %arg5: memref<72x384xf32, #tpu.memory_space<vmem>>) attributes {dimension_semantics = [#tpu.dimension_semantics<parallel>], iteration_bounds = array<i64: 2>, scalar_prefetch = 0 : i64, scratch_operands = 1 : i64, tpu.core_type = #tpu.core_type<tc>, window_params = [{transform_indices = @transform_0, window_bounds = array<i64: 1, 8, 432>}, {pipeline_mode = #tpu.pipeline_mode<synchronous>, transform_indices = @transform_1, window_bounds = array<i64: 8, 72>}, {pipeline_mode = #tpu.pipeline_mode<synchronous>, transform_indices = @transform_2, window_bounds = array<i64: 8, 1>}, {transform_indices = @transform_3, window_bounds = array<i64: 1, 8, 384>}]} {
    %c0 = arith.constant 0 : index
    %c0_0 = arith.constant 0 : index
    %c0_1 = arith.constant 0 : index
    %0 = vector.load %arg1[%c0, %c0_0, %c0_1] : memref<1x8x432xf32, #tpu.memory_space<vmem>>, vector<1x8x432xf32>
    %1 = vector.shape_cast %0 : vector<1x8x432xf32> to vector<8x432xf32>
    %2 = vector.extract_strided_slice %1 {offsets = [0, 0], sizes = [8, 384], strides = [1, 1]} : vector<8x432xf32> to vector<8x384xf32>
    %c0_2 = arith.constant 0 : index
    %c0_3 = arith.constant 0 : index
    %3 = vector.load %arg5[%c0_2, %c0_3] : memref<72x384xf32, #tpu.memory_space<vmem>>, vector<8x384xf32>
    tpu.vector_store %arg5[%c0_2, %c0_3], %2 {strides = array<i32>} : memref<72x384xf32, #tpu.memory_space<vmem>>, vector<8x384xf32>,
    %4 = vector.extract_strided_slice %1 {offsets = [0, 1], sizes = [8, 384], strides = [1, 1]} : vector<8x432xf32> to vector<8x384xf32>
    %c8 = arith.constant 8 : index
    %c0_4 = arith.constant 0 : index
    %5 = vector.load %arg5[%c8, %c0_4] : memref<72x384xf32, #tpu.memory_space<vmem>>, vector<8x384xf32>
    tpu.vector_store %arg5[%c8, %c0_4], %4 {strides = array<i32>} : memref<72x384xf32, #tpu.memory_space<vmem>>, vector<8x384xf32>,
    %6 = vector.extract_strided_slice %1 {offsets = [0, 2], sizes = [8, 384], strides = [1, 1]} : vector<8x432xf32> to vector<8x384xf32>
    %c16 = arith.constant 16 : index
    %c0_5 = arith.constant 0 : index
    %7 = vector.load %arg5[%c16, %c0_5] : memref<72x384xf32, #tpu.memory_space<vmem>>, vector<8x384xf32>
    tpu.vector_store %arg5[%c16, %c0_5], %6 {strides = array<i32>} : memref<72x384xf32, #tpu.memory_space<vmem>>, vector<8x384xf32>,
    %8 = vector.extract_strided_slice %1 {offsets = [0, 18], sizes = [8, 384], strides = [1, 1]} : vector<8x432xf32> to vector<8x384xf32>
    %c24 = arith.constant 24 : index
    %c0_6 = arith.constant 0 : index
    %9 = vector.load %arg5[%c24, %c0_6] : memref<72x384xf32, #tpu.memory_space<vmem>>, vector<8x384xf32>
    tpu.vector_store %arg5[%c24, %c0_6], %8 {strides = array<i32>} : memref<72x384xf32, #tpu.memory_space<vmem>>, vector<8x384xf32>,
    %10 = vector.extract_strided_slice %1 {offsets = [0, 19], sizes = [8, 384], strides = [1, 1]} : vector<8x432xf32> to vector<8x384xf32>
    %c32 = arith.constant 32 : index
    %c0_7 = arith.constant 0 : index
    %11 = vector.load %arg5[%c32, %c0_7] : memref<72x384xf32, #tpu.memory_space<vmem>>, vector<8x384xf32>
    tpu.vector_store %arg5[%c32, %c0_7], %10 {strides = array<i32>} : memref<72x384xf32, #tpu.memory_space<vmem>>, vector<8x384xf32>,
    %12 = vector.extract_strided_slice %1 {offsets = [0, 20], sizes = [8, 384], strides = [1, 1]} : vector<8x432xf32> to vector<8x384xf32>
    %c40 = arith.constant 40 : index
    %c0_8 = arith.constant 0 : index
    %13 = vector.load %arg5[%c40, %c0_8] : memref<72x384xf32, #tpu.memory_space<vmem>>, vector<8x384xf32>
    tpu.vector_store %arg5[%c40, %c0_8], %12 {strides = array<i32>} : memref<72x384xf32, #tpu.memory_space<vmem>>, vector<8x384xf32>,
    %14 = vector.extract_strided_slice %1 {offsets = [0, 36], sizes = [8, 384], strides = [1, 1]} : vector<8x432xf32> to vector<8x384xf32>
    %c48 = arith.constant 48 : index
    %c0_9 = arith.constant 0 : index
    %15 = vector.load %arg5[%c48, %c0_9] : memref<72x384xf32, #tpu.memory_space<vmem>>, vector<8x384xf32>
    tpu.vector_store %arg5[%c48, %c0_9], %14 {strides = array<i32>} : memref<72x384xf32, #tpu.memory_space<vmem>>, vector<8x384xf32>,
    %16 = vector.extract_strided_slice %1 {offsets = [0, 37], sizes = [8, 384], strides = [1, 1]} : vector<8x432xf32> to vector<8x384xf32>
    %c56 = arith.constant 56 : index
    %c0_10 = arith.constant 0 : index
    %17 = vector.load %arg5[%c56, %c0_10] : memref<72x384xf32, #tpu.memory_space<vmem>>, vector<8x384xf32>
    tpu.vector_store %arg5[%c56, %c0_10], %16 {strides = array<i32>} : memref<72x384xf32, #tpu.memory_space<vmem>>, vector<8x384xf32>,
    %18 = vector.extract_strided_slice %1 {offsets = [0, 38], sizes = [8, 384], strides = [1, 1]} : vector<8x432xf32> to vector<8x384xf32>
    %c64 = arith.constant 64 : index
    %c0_11 = arith.constant 0 : index
    %19 = vector.load %arg5[%c64, %c0_11] : memref<72x384xf32, #tpu.memory_space<vmem>>, vector<8x384xf32>
    tpu.vector_store %arg5[%c64, %c0_11], %18 {strides = array<i32>} : memref<72x384xf32, #tpu.memory_space<vmem>>, vector<8x384xf32>,
    %c0_12 = arith.constant 0 : index
    %c0_13 = arith.constant 0 : index
    %20 = vector.load %arg2[%c0_12, %c0_13] : memref<8x72xf32, #tpu.memory_space<vmem>>, vector<8x72xf32>
    %c0_14 = arith.constant 0 : index
    %c0_15 = arith.constant 0 : index
    %21 = vector.load %arg5[%c0_14, %c0_15] : memref<72x384xf32, #tpu.memory_space<vmem>>, vector<72x384xf32>
    %cst = arith.constant dense<0.000000e+00> : vector<8x384xf32>
    %22 = tpu.matmul %20, %21, %cst {dimension_numbers = #tpu.dot_dimension_numbers<[1], [0], [0], [1], [0, 0, 1, 1], [], []>} : vector<8x72xf32>, vector<72x384xf32>, vector<8x384xf32> -> vector<8x384xf32>
    %c0_16 = arith.constant 0 : index
    %c0_17 = arith.constant 0 : index
    %23 = vector.load %arg3[%c0_16, %c0_17] : memref<8x1xf32, #tpu.memory_space<vmem>>, vector<8x1xf32>
    %24 = vector.broadcast %23 : vector<8x1xf32> to vector<8x384xf32>
    %25 = arith.addf %22, %24 : vector<8x384xf32>
    %c0_18 = arith.constant 0 : index
    %c0_19 = arith.constant 0 : index
    %c0_20 = arith.constant 0 : index
    %26 = vector.load %arg4[%c0_18, %c0_19, %c0_20] : memref<1x8x384xf32, #tpu.memory_space<vmem>>, vector<1x8x384xf32>
    %27 = vector.shape_cast %26 : vector<1x8x384xf32> to vector<8x384xf32>
    %28 = vector.shape_cast %25 : vector<8x384xf32> to vector<1x8x384xf32>
    tpu.vector_store %arg4[%c0_18, %c0_19, %c0_20], %28 {strides = array<i32>} : memref<1x8x384xf32, #tpu.memory_space<vmem>>, vector<1x8x384xf32>,
    return
  }
  func.func @transform_0(%arg0: i32) -> (i32, i32, i32) {
    %c0_i32 = arith.constant 0 : i32
    %c0_i32_0 = arith.constant 0 : i32
    %c0_i32_1 = arith.constant 0 : i32
    return %arg0, %c0_i32, %c0_i32_0 : i32, i32, i32
  }
  func.func @transform_1(%arg0: i32) -> (i32, i32) {
    %c0_i32 = arith.constant 0 : i32
    %c0_i32_0 = arith.constant 0 : i32
    %c0_i32_1 = arith.constant 0 : i32
    return %c0_i32, %c0_i32_0 : i32, i32
  }
  func.func @transform_2(%arg0: i32) -> (i32, i32) {
    %c0_i32 = arith.constant 0 : i32
    %c0_i32_0 = arith.constant 0 : i32
    %c0_i32_1 = arith.constant 0 : i32
    return %c0_i32, %c0_i32_0 : i32, i32
  }
  func.func @transform_3(%arg0: i32) -> (i32, i32, i32) {
    %c0_i32 = arith.constant 0 : i32
    %c0_i32_0 = arith.constant 0 : i32
    %c0_i32_1 = arith.constant 0 : i32
    return %arg0, %c0_i32, %c0_i32_0 : i32, i32, i32
  }
}

</mosaic_0001>

<llo_original>
// kernel: tpu_custom_call.1
$region0: #{tpu_custom_call.1}
  #allocation0 [shape = 'u32[]', space=smem, size = 0x4, offset = 0x4, fixed_abs, tag = 'smem constant byte address 0x4 - core index']
  #allocation1 [shape = 'u32[72,128]{1,0:T(1,128)}', space=vmem, size = 0x9000, scoped, tag = 'internal scratch']
  #allocation2 [shape = 'f32[72,384]{1,0:T(8,128)}', space=vmem, size = 0x1b000, scoped, tag = 'scratch operand']
  %s0 = inlined_call_operand.hbm [shape: f32[2,8,432], index: 0, kind: input, shape index: {}]
  %s1 = inlined_call_operand.vmem [shape: f32[8,72], index: 1, kind: input, shape index: {}]
  %s2 = inlined_call_operand.vmem [shape: f32[8,1], index: 2, kind: input, shape index: {}]
  %s3 = inlined_call_operand.hbm [shape: f32[2,8,384], index: 3, kind: output, shape index: {}]
  %s4 = sld [smem:[#allocation0]]
  $region49: #{tpu_custom_call.1} parent=0
    _
  %s6 = ssub.s32 1, %s4
  %s7 = scalar_select 0, %s6, %s4
  $region1: #{tpu_custom_call.1} parent=0
    #allocation3 [shape = 'u8[32768]{0}', space=vmem, size = 0x8000, scoped, tag = 'input window, operand 0']
    #allocation4 [shape = 's32[2]{0}', space=sflag, size = 0x8, scoped, tag = 'scoped memory for tpu_custom_call.1']
    #allocation5 [shape = 's32[2]{0}', space=sflag, size = 0x8, scoped, tag = 'scoped memory for tpu_custom_call.1']
    #allocation6 [shape = 'u8[24576]{0}', space=vmem, size = 0x6000, scoped, tag = 'output window, operand 0']
    %8 = vsyncpa [#allocation4], 0
    %s9 = scalar_lea.sflag [#allocation4], 1
    %10 = vsyncpa %s9, 0
    %11 = vsyncpa [#allocation5], 0
    %s12 = scalar_lea.sflag [#allocation5], 1
    %13 = vsyncpa %s12, 0
    loop: start=0, step=1, limit=4
    $region2: #{tpu_custom_call.1} parent=1 // loop_pre_header
      _
    $region3: #{tpu_custom_call.1} parent=1 // loop_header
      %s15 = sphi 0, %s19
      %p16 = scmp.ge.s32.totalorder %s15, 4
      %s25 = sphi 0, %s27
      %s28 = sphi 0, %s25
      %s29 = sphi 0, %s28
      %s45 = sphi 0, %s29
      %s49 = sphi 0, %s49
      %s51 = sphi 0, %s49
      %s52 = sphi 0, %s51
      %s66 = sphi 0, %s52
      %s70 = sphi 0, %s70
      %s72 = sphi 0, %s70
      %s73 = sphi 0, %s72
      %s87 = sphi 0, %s73
      %s93 = sphi 0, %s95
      %s96 = sphi 0, %s93
      %s97 = sphi 0, %s96
      %s113 = sphi 0, %s97
    $region4: #{tpu_custom_call.1} parent=1 // loop_header_branch
      %18 = sbr.rel (%p16) target = $region8
    $region5: #{tpu_custom_call.1} parent=1 // loop_body
      %s20 = ssub.s32 %s15, 1
      %s21 = ssub.s32 %s15, 2
      %s22 = sadd.s32 %s15, 1
      %s23 = ssub.s32 %s15, %s22
      %p24 = scmp.eq.s32.totalorder %s23, 0
      %s26 = sadd.s32 %s25, 1
      %s27 = scalar_select %p24, %s25, %s26
      %p30 = pneg %p24
      %p31 = scmp.eq.s32.totalorder %s15, 1
      %p32 = por %p30, %p31
      %p33 = scmp.ne.s32.totalorder %s25, %s28
      %p34 = scmp.eq.s32.totalorder %s15, 0
      %p35 = por %p33, %p34
      %p36 = scmp.ne.s32.totalorder %s25, %s28
      %p37 = scmp.eq.s32.totalorder %s20, 1
      %p38 = por %p36, %p37
      %p39 = scmp.ne.s32.totalorder %s28, %s29
      %p40 = scmp.eq.s32.totalorder %s20, 0
      %p41 = por %p39, %p40
      %p42 = scmp.ne.s32.totalorder %s28, %s29
      %p43 = scmp.eq.s32.totalorder %s21, 1
      %p44 = por %p42, %p43
      %p46 = scmp.ne.s32.totalorder %s29, %s45
      %p47 = scmp.eq.s32.totalorder %s21, 0
      %p48 = por %p46, %p47
      %s50 = sadd.s32 %s49, 1
      %p53 = scmp.eq.s32.totalorder %s15, 1
      %p54 = scmp.ne.s32.totalorder %s49, %s51
      %p55 = scmp.eq.s32.totalorder %s15, 0
      %p56 = por %p54, %p55
      %p57 = scmp.ne.s32.totalorder %s49, %s51
      %p58 = scmp.eq.s32.totalorder %s20, 1
      %p59 = por %p57, %p58
      %p60 = scmp.ne.s32.totalorder %s51, %s52
      %p61 = scmp.eq.s32.totalorder %s20, 0
      %p62 = por %p60, %p61
      %p63 = scmp.ne.s32.totalorder %s51, %s52
      %p64 = scmp.eq.s32.totalorder %s21, 1
      %p65 = por %p63, %p64
      %p67 = scmp.ne.s32.totalorder %s52, %s66
      %p68 = scmp.eq.s32.totalorder %s21, 0
      %p69 = por %p67, %p68
      %s71 = sadd.s32 %s70, 1
      %p74 = scmp.eq.s32.totalorder %s15, 1
      %p75 = scmp.ne.s32.totalorder %s70, %s72
      %p76 = scmp.eq.s32.totalorder %s15, 0
      %p77 = por %p75, %p76
      %p78 = scmp.ne.s32.totalorder %s70, %s72
      %p79 = scmp.eq.s32.totalorder %s20, 1
      %p80 = por %p78, %p79
      %p81 = scmp.ne.s32.totalorder %s72, %s73
      %p82 = scmp.eq.s32.totalorder %s20, 0
      %p83 = por %p81, %p82
      %p84 = scmp.ne.s32.totalorder %s72, %s73
      %p85 = scmp.eq.s32.totalorder %s21, 1
      %p86 = por %p84, %p85
      %p88 = scmp.ne.s32.totalorder %s73, %s87
      %p89 = scmp.eq.s32.totalorder %s21, 0
      %p90 = por %p88, %p89
      %s91 = ssub.s32 %s15, %s22
      %p92 = scmp.eq.s32.totalorder %s91, 0
      %s94 = sadd.s32 %s93, 1
      %s95 = scalar_select %p92, %s93, %s94
      %p98 = pneg %p92
      %p99 = scmp.eq.s32.totalorder %s15, 1
      %p100 = por %p98, %p99
      %p101 = scmp.ne.s32.totalorder %s93, %s96
      %p102 = scmp.eq.s32.totalorder %s15, 0
      %p103 = por %p101, %p102
      %p104 = scmp.ne.s32.totalorder %s93, %s96
      %p105 = scmp.eq.s32.totalorder %s20, 1
      %p106 = por %p104, %p105
      %p107 = scmp.ne.s32.totalorder %s96, %s97
      %p108 = scmp.eq.s32.totalorder %s20, 0
      %p109 = por %p107, %p108
      %p110 = scmp.ne.s32.totalorder %s96, %s97
      %p111 = scmp.eq.s32.totalorder %s21, 1
      %p112 = por %p110, %p111
      %p114 = scmp.ne.s32.totalorder %s97, %s113
      %p115 = scmp.eq.s32.totalorder %s21, 0
      %p116 = por %p114, %p115
      %p117 = scmp.le.s32.totalorder 1, %s15
      %p118 = scmp.lt.s32.totalorder %s15, 3
      %p119 = pnand %p117, %p118
      %p120 = pneg %p119
      // Predicated region
      $region9: #{tpu_custom_call.1} parent=5 // pred_check
        _
      $region10: #{tpu_custom_call.1} parent=5 // pred_check_branch
        %122 = sbr.rel (%p119) target = $region12
      $region11: #{tpu_custom_call.1} parent=5 // pred_region
        %s123 = ssub.s32 %s15, 1
        // Predicated region
        $region13: #{tpu_custom_call.1} parent=11 // pred_check
          %p124 = pneg %p62
        $region14: #{tpu_custom_call.1} parent=11 // pred_check_branch
          %126 = sbr.rel (%p124) target = $region16
        $region15: #{tpu_custom_call.1} parent=11 // pred_region
          _
        $region16: #{tpu_custom_call.1} parent=11 // pred_fallthru
          _
        // Predicated region
        $region17: #{tpu_custom_call.1} parent=11 // pred_check
          %p127 = pneg %p83
        $region18: #{tpu_custom_call.1} parent=11 // pred_check_branch
          %129 = sbr.rel (%p127) target = $region20
        $region19: #{tpu_custom_call.1} parent=11 // pred_region
          _
        $region20: #{tpu_custom_call.1} parent=11 // pred_fallthru
          _
      $region12: #{tpu_custom_call.1} parent=5 // pred_fallthru
        _
      %p130 = scmp.lt.s32.totalorder %s15, 2
      // Predicated region
      $region21: #{tpu_custom_call.1} parent=5 // pred_check
        %p131 = pneg %p130
      $region22: #{tpu_custom_call.1} parent=5 // pred_check_branch
        %133 = sbr.rel (%p131) target = $region24
      $region23: #{tpu_custom_call.1} parent=5 // pred_region
        // Predicated region
        $region25: #{tpu_custom_call.1} parent=23 // pred_check
          %p134 = pneg %p35
        $region26: #{tpu_custom_call.1} parent=23 // pred_check_branch
          %136 = sbr.rel (%p134) target = $region28
        $region27: #{tpu_custom_call.1} parent=23 // pred_region
          %s137 = sand.u32 %s25, 1
          %s138 = scalar_lea.sflag [#allocation4], %s137
          %s139 = sand.u32 %s25, 1
          %s140 = smul.addr %s139, 32
          %s141 = scalar_lea.vmem [#allocation3], %s140
          %143 = vsyncadd %s138, 0
          %s144 = smul.addr %s15, 4
          %s145 = smul.addr %s144, 8
          %s146 = scalar_lea.hbm %s0, %s145
          %s148 = sshll.u32 %s146, 4
          %s149 = int_to_ptr.hbm [resolvable:$true] %s148
          %s150 = sshll.u32 %s141, 4
          %s151 = int_to_ptr.vmem [resolvable:$true] %s150
          %153 = dma.hbm_to_vmem [thread:$0]  %s149, 512, %s151, %s138
        $region28: #{tpu_custom_call.1} parent=23 // pred_fallthru
          _
      $region24: #{tpu_custom_call.1} parent=5 // pred_fallthru
        _
      %p154 = scmp.le.s32.totalorder 1, %s15
      %p155 = scmp.lt.s32.totalorder %s15, 3
      %p156 = pnand %p154, %p155
      %p157 = pneg %p156
      // Predicated region
      $region29: #{tpu_custom_call.1} parent=5 // pred_check
        _
      $region30: #{tpu_custom_call.1} parent=5 // pred_check_branch
        %159 = sbr.rel (%p156) target = $region32
      $region31: #{tpu_custom_call.1} parent=5 // pred_region
        %s160 = ssub.s32 %s15, 1
        %s161 = sand.u32 %s28, 1
        %s162 = scalar_lea.sflag [#allocation4], %s161
        %s163 = sand.u32 %s28, 1
        %s164 = smul.addr %s163, 32
        %s165 = scalar_lea.vmem [#allocation3], %s164
        // Predicated region
        $region33: #{tpu_custom_call.1} parent=31 // pred_check
          %p166 = pneg %p41
        $region34: #{tpu_custom_call.1} parent=31 // pred_check_branch
          %168 = sbr.rel (%p166) target = $region36
        $region35: #{tpu_custom_call.1} parent=31 // pred_region
          %170 = dma.done %s162, 512
        $region36: #{tpu_custom_call.1} parent=31 // pred_fallthru
          _
        %s171 = sand.u32 %s28, 1
        %s172 = scalar_lea.sflag [#allocation4], %s171
        %s173 = sand.u32 %s28, 1
        %s174 = smul.addr %s173, 32
        %s175 = scalar_lea.vmem [#allocation3], %s174
        %p176 = pneg %p41
        %p177 = pneg %p38
        %p178 = pneg %p62
        %p179 = pneg %p59
        %p180 = pneg %p83
        %p181 = pneg %p80
        %p182 = pneg %p109
        %p183 = pneg %p106
        %s184 = sand.u32 %s96, 1
        %s185 = scalar_lea.sflag [#allocation5], %s184
        %s186 = sand.u32 %s96, 1
        %s187 = smul.addr %s186, 24
        %s188 = scalar_lea.vmem [#allocation6], %s187
        %v189 = vld [vmem:[%s165] sm:$0xff]
        %v190 = vld [vmem:[%s165 + $0x8] sm:$0xff]
        %v191 = vld [vmem:[%s165 + $0x10] sm:$0xff]
        %v192 = vld [vmem:[%s165 + $0x18] sm:$0xff]
        %193 = vst [vmem:[#allocation2] sm:$0xff] %v189
        %194 = vst [vmem:[#allocation2 + $0x8] sm:$0xff] %v190
        %195 = vst [vmem:[#allocation2 + $0x10] sm:$0xff] %v191
        %200 = vrot.lane.b32.xlu0 %v189, 127
        %v201 = vpop.permute.xlu0 %200
        %202 = vrot.lane.b32.xlu0 %v190, 127
        %v203 = vpop.permute.xlu0 %202
        %204 = vrot.lane.b32.xlu0 %v191, 127
        %v205 = vpop.permute.xlu0 %204
        %206 = vrot.lane.b32.xlu0 %v192, 127
        %v207 = vpop.permute.xlu0 %206
        %vm208 = vcmask 1039360
        %v209 = vsel %vm208, %v201, %v203
        %v210 = vsel %vm208, %v203, %v205
        %v211 = vsel %vm208, %v205, %v207
        %215 = vst [vmem:[#allocation2 + $0x18] sm:$0xff] %v209
        %216 = vst [vmem:[#allocation2 + $0x20] sm:$0xff] %v210
        %217 = vst [vmem:[#allocation2 + $0x28] sm:$0xff] %v211
        %218 = vrot.lane.b32.xlu0 %v189, 126
        %v219 = vpop.permute.xlu0 %218
        %220 = vrot.lane.b32.xlu0 %v190, 126
        %v221 = vpop.permute.xlu0 %220
        %222 = vrot.lane.b32.xlu0 %v191, 126
        %v223 = vpop.permute.xlu0 %222
        %224 = vrot.lane.b32.xlu0 %v192, 126
        %v225 = vpop.permute.xlu0 %224
        %vm226 = vcmask 1031168
        %v227 = vsel %vm226, %v219, %v221
        %v228 = vsel %vm226, %v221, %v223
        %v229 = vsel %vm226, %v223, %v225
        %233 = vst [vmem:[#allocation2 + $0x30] sm:$0xff] %v227
        %234 = vst [vmem:[#allocation2 + $0x38] sm:$0xff] %v228
        %235 = vst [vmem:[#allocation2 + $0x40] sm:$0xff] %v229
        %236 = vrot.lane.b32.xlu0 %v189, 110
        %v237 = vpop.permute.xlu0 %236
        %238 = vrot.lane.b32.xlu0 %v190, 110
        %v239 = vpop.permute.xlu0 %238
        %240 = vrot.lane.b32.xlu0 %v191, 110
        %v241 = vpop.permute.xlu0 %240
        %242 = vrot.lane.b32.xlu0 %v192, 110
        %v243 = vpop.permute.xlu0 %242
        %vm244 = vcmask 900096
        %v245 = vsel %vm244, %v237, %v239
        %v246 = vsel %vm244, %v239, %v241
        %v247 = vsel %vm244, %v241, %v243
        %251 = vst [vmem:[#allocation2 + $0x48] sm:$0xff] %v245
        %252 = vst [vmem:[#allocation2 + $0x50] sm:$0xff] %v246
        %253 = vst [vmem:[#allocation2 + $0x58] sm:$0xff] %v247
        %254 = vrot.lane.b32.xlu0 %v189, 109
        %v255 = vpop.permute.xlu0 %254
        %256 = vrot.lane.b32.xlu0 %v190, 109
        %v257 = vpop.permute.xlu0 %256
        %258 = vrot.lane.b32.xlu0 %v191, 109
        %v259 = vpop.permute.xlu0 %258
        %260 = vrot.lane.b32.xlu0 %v192, 109
        %v261 = vpop.permute.xlu0 %260
        %vm262 = vcmask 891904
        %v263 = vsel %vm262, %v255, %v257
        %v264 = vsel %vm262, %v257, %v259
        %v265 = vsel %vm262, %v259, %v261
        %269 = vst [vmem:[#allocation2 + $0x60] sm:$0xff] %v263
        %270 = vst [vmem:[#allocation2 + $0x68] sm:$0xff] %v264
        %271 = vst [vmem:[#allocation2 + $0x70] sm:$0xff] %v265
        %272 = vrot.lane.b32.xlu0 %v189, 108
        %v273 = vpop.permute.xlu0 %272
        %274 = vrot.lane.b32.xlu0 %v190, 108
        %v275 = vpop.permute.xlu0 %274
        %276 = vrot.lane.b32.xlu0 %v191, 108
        %v277 = vpop.permute.xlu0 %276
        %278 = vrot.lane.b32.xlu0 %v192, 108
        %v279 = vpop.permute.xlu0 %278
        %vm280 = vcmask 883712
        %v281 = vsel %vm280, %v273, %v275
        %v282 = vsel %vm280, %v275, %v277
        %v283 = vsel %vm280, %v277, %v279
        %287 = vst [vmem:[#allocation2 + $0x78] sm:$0xff] %v281
        %288 = vst [vmem:[#allocation2 + $0x80] sm:$0xff] %v282
        %289 = vst [vmem:[#allocation2 + $0x88] sm:$0xff] %v283
        %290 = vrot.lane.b32.xlu0 %v189, 92
        %v291 = vpop.permute.xlu0 %290
        %292 = vrot.lane.b32.xlu0 %v190, 92
        %v293 = vpop.permute.xlu0 %292
        %294 = vrot.lane.b32.xlu0 %v191, 92
        %v295 = vpop.permute.xlu0 %294
        %296 = vrot.lane.b32.xlu0 %v192, 92
        %v297 = vpop.permute.xlu0 %296
        %vm298 = vcmask 752640
        %v299 = vsel %vm298, %v291, %v293
        %v300 = vsel %vm298, %v293, %v295
        %v301 = vsel %vm298, %v295, %v297
        %305 = vst [vmem:[#allocation2 + $0x90] sm:$0xff] %v299
        %306 = vst [vmem:[#allocation2 + $0x98] sm:$0xff] %v300
        %307 = vst [vmem:[#allocation2 + $0xa0] sm:$0xff] %v301
        %308 = vrot.lane.b32.xlu0 %v189, 91
        %v309 = vpop.permute.xlu0 %308
        %310 = vrot.lane.b32.xlu0 %v190, 91
        %v311 = vpop.permute.xlu0 %310
        %312 = vrot.lane.b32.xlu0 %v191, 91
        %v313 = vpop.permute.xlu0 %312
        %314 = vrot.lane.b32.xlu0 %v192, 91
        %v315 = vpop.permute.xlu0 %314
        %vm316 = vcmask 744448
        %v317 = vsel %vm316, %v309, %v311
        %v318 = vsel %vm316, %v311, %v313
        %v319 = vsel %vm316, %v313, %v315
        %323 = vst [vmem:[#allocation2 + $0xa8] sm:$0xff] %v317
        %324 = vst [vmem:[#allocation2 + $0xb0] sm:$0xff] %v318
        %325 = vst [vmem:[#allocation2 + $0xb8] sm:$0xff] %v319
        %326 = vrot.lane.b32.xlu0 %v189, 90
        %v327 = vpop.permute.xlu0 %326
        %328 = vrot.lane.b32.xlu0 %v190, 90
        %v329 = vpop.permute.xlu0 %328
        %330 = vrot.lane.b32.xlu0 %v191, 90
        %v331 = vpop.permute.xlu0 %330
        %332 = vrot.lane.b32.xlu0 %v192, 90
        %v333 = vpop.permute.xlu0 %332
        %vm334 = vcmask 736256
        %v335 = vsel %vm334, %v327, %v329
        %v336 = vsel %vm334, %v329, %v331
        %v337 = vsel %vm334, %v331, %v333
        %341 = vst [vmem:[#allocation2 + $0xc0] sm:$0xff] %v335
        %342 = vst [vmem:[#allocation2 + $0xc8] sm:$0xff] %v336
        %343 = vst [vmem:[#allocation2 + $0xd0] sm:$0xff] %v337
        %v344 = vld [vmem:[%s1] sm:$0xff]
        %v345 = vld [vmem:[#allocation2] sm:$0xff]
        %v346 = vld [vmem:[#allocation2 + $0x8] sm:$0xff]
        %v347 = vld [vmem:[#allocation2 + $0x10] sm:$0xff]
        %v348 = vld [vmem:[#allocation2 + $0x18] sm:$0xff]
        %v349 = vld [vmem:[#allocation2 + $0x20] sm:$0xff]
        %v350 = vld [vmem:[#allocation2 + $0x28] sm:$0xff]
        %v351 = vld [vmem:[#allocation2 + $0x30] sm:$0xff]
        %v352 = vld [vmem:[#allocation2 + $0x38] sm:$0xff]
        %v353 = vld [vmem:[#allocation2 + $0x40] sm:$0xff]
        %v354 = vld [vmem:[#allocation2 + $0x48] sm:$0xff]
        %v355 = vld [vmem:[#allocation2 + $0x50] sm:$0xff]
        %v356 = vld [vmem:[#allocation2 + $0x58] sm:$0xff]
        %v357 = vld [vmem:[#allocation2 + $0x60] sm:$0xff]
        %v358 = vld [vmem:[#allocation2 + $0x68] sm:$0xff]
        %v359 = vld [vmem:[#allocation2 + $0x70] sm:$0xff]
        %v360 = vld [vmem:[#allocation2 + $0x78] sm:$0xff]
        %v361 = vld [vmem:[#allocation2 + $0x80] sm:$0xff]
        %v362 = vld [vmem:[#allocation2 + $0x88] sm:$0xff]
        %v363 = vld [vmem:[#allocation2 + $0x90] sm:$0xff]
        %v364 = vld [vmem:[#allocation2 + $0x98] sm:$0xff]
        %v365 = vld [vmem:[#allocation2 + $0xa0] sm:$0xff]
        %v366 = vld [vmem:[#allocation2 + $0xa8] sm:$0xff]
        %v367 = vld [vmem:[#allocation2 + $0xb0] sm:$0xff]
        %v368 = vld [vmem:[#allocation2 + $0xb8] sm:$0xff]
        %v369 = vld [vmem:[#allocation2 + $0xc0] sm:$0xff]
        %v370 = vld [vmem:[#allocation2 + $0xc8] sm:$0xff]
        %v371 = vld [vmem:[#allocation2 + $0xd0] sm:$0xff]
        %v372 = vld [vmem:[%s2] sm:$0xff]
        %374 = vset.pattern.permute.xlu0 0
        %375 = vperm.xlu0 %374, %v372
        %v376 = vpop.permute.xlu0 %375
        %vm378 = vcmask 588800
        %v380 = vsel %vm378, %v344, 0
        %382 = vmatpush.msra.mxu0 0.0
        %383 = vmatpush.msra.mxu0 0.0
        %384 = vmatpush.msra.mxu0 0.0
        %385 = vmatpush.msra.mxu0 0.0
        %386 = vmatpush.msra.mxu0 0.0
        %387 = vmatpush.msra.mxu0 0.0
        %388 = vmatpush.msra.mxu0 0.0
        %389 = vmatpush.msra.mxu0 %v369
        %390 = vmatpush.msra.mxu0 %v366
        %391 = vmatpush.msra.mxu0 %v363
        %392 = vmatpush.msra.mxu0 %v360
        %393 = vmatpush.msra.mxu0 %v357
        %394 = vmatpush.msra.mxu0 %v354
        %395 = vmatpush.msra.mxu0 %v351
        %396 = vmatpush.msra.mxu0 %v348
        %397 = vmatpush.msra.mxu0 %v345
        %398 = vmatmul.f32.gmra.mxu0 %v380
        %v399 = vpop.f32.mrf.mxu0
        %v400 = vadd.f32 %v376, %v399
        %401 = vdwg.mxu0
        %402 = vmatpush.msra.mxu0 0.0
        %403 = vmatpush.msra.mxu0 0.0
        %404 = vmatpush.msra.mxu0 0.0
        %405 = vmatpush.msra.mxu0 0.0
        %406 = vmatpush.msra.mxu0 0.0
        %407 = vmatpush.msra.mxu0 0.0
        %408 = vmatpush.msra.mxu0 0.0
        %409 = vmatpush.msra.mxu0 %v370
        %410 = vmatpush.msra.mxu0 %v367
        %411 = vmatpush.msra.mxu0 %v364
        %412 = vmatpush.msra.mxu0 %v361
        %413 = vmatpush.msra.mxu0 %v358
        %414 = vmatpush.msra.mxu0 %v355
        %415 = vmatpush.msra.mxu0 %v352
        %416 = vmatpush.msra.mxu0 %v349
        %417 = vmatpush.msra.mxu0 %v346
        %418 = vmatmul.f32.gmra.mxu0 %v380
        %v419 = vpop.f32.mrf.mxu0
        %v420 = vadd.f32 %v376, %v419
        %421 = vdwg.mxu0
        %422 = vmatpush.msra.mxu0 0.0
        %423 = vmatpush.msra.mxu0 0.0
        %424 = vmatpush.msra.mxu0 0.0
        %425 = vmatpush.msra.mxu0 0.0
        %426 = vmatpush.msra.mxu0 0.0
        %427 = vmatpush.msra.mxu0 0.0
        %428 = vmatpush.msra.mxu0 0.0
        %429 = vmatpush.msra.mxu0 %v371
        %430 = vmatpush.msra.mxu0 %v368
        %431 = vmatpush.msra.mxu0 %v365
        %432 = vmatpush.msra.mxu0 %v362
        %433 = vmatpush.msra.mxu0 %v359
        %434 = vmatpush.msra.mxu0 %v356
        %435 = vmatpush.msra.mxu0 %v353
        %436 = vmatpush.msra.mxu0 %v350
        %437 = vmatpush.msra.mxu0 %v347
        %438 = vmatmul.f32.gmra.mxu0 %v380
        %v439 = vpop.f32.mrf.mxu0
        %v440 = vadd.f32 %v376, %v439
        %441 = vdwg.mxu0
        %442 = vst [vmem:[%s188] sm:$0xff] %v400
        %443 = vst [vmem:[%s188 + $0x8] sm:$0xff] %v420
        %444 = vst [vmem:[%s188 + $0x10] sm:$0xff] %v440
        %s445 = sand.u32 %s96, 1
        %s446 = scalar_lea.sflag [#allocation5], %s445
        %s447 = sand.u32 %s96, 1
        %s448 = smul.addr %s447, 24
        %s449 = scalar_lea.vmem [#allocation6], %s448
        // Predicated region
        $region37: #{tpu_custom_call.1} parent=31 // pred_check
          %p450 = pneg %p106
        $region38: #{tpu_custom_call.1} parent=31 // pred_check_branch
          %452 = sbr.rel (%p450) target = $region40
        $region39: #{tpu_custom_call.1} parent=31 // pred_region
          %454 = vsyncadd %s446, 0
          %s455 = smul.addr %s20, 3
          %s456 = smul.addr %s455, 8
          %s457 = scalar_lea.hbm %s3, %s456
          %s459 = sshll.u32 %s449, 4
          %s460 = int_to_ptr.vmem [resolvable:$true] %s459
          %s461 = sshll.u32 %s457, 4
          %s462 = int_to_ptr.hbm [resolvable:$true] %s461
          %464 = dma.vmem_to_hbm [thread:$0]  %s460, 384, %s462, %s446
        $region40: #{tpu_custom_call.1} parent=31 // pred_fallthru
          _
      $region32: #{tpu_custom_call.1} parent=5 // pred_fallthru
        _
      %p465 = scmp.le.s32.totalorder 2, %s15
      // Predicated region
      $region41: #{tpu_custom_call.1} parent=5 // pred_check
        %p466 = pneg %p465
      $region42: #{tpu_custom_call.1} parent=5 // pred_check_branch
        %468 = sbr.rel (%p466) target = $region44
      $region43: #{tpu_custom_call.1} parent=5 // pred_region
        %s469 = ssub.s32 %s15, 2
        // Predicated region
        $region45: #{tpu_custom_call.1} parent=43 // pred_check
          %p470 = pneg %p112
        $region46: #{tpu_custom_call.1} parent=43 // pred_check_branch
          %472 = sbr.rel (%p470) target = $region48
        $region47: #{tpu_custom_call.1} parent=43 // pred_region
          %s473 = sand.u32 %s97, 1
          %s474 = scalar_lea.sflag [#allocation5], %s473
          %s475 = sand.u32 %s97, 1
          %s476 = smul.addr %s475, 24
          %s477 = scalar_lea.vmem [#allocation6], %s476
          %479 = dma.done %s474, 384
        $region48: #{tpu_custom_call.1} parent=43 // pred_fallthru
          _
      $region44: #{tpu_custom_call.1} parent=5 // pred_fallthru
        _
    $region6: #{tpu_custom_call.1} parent=1 // loop_footer
      %s19 = sadd.s32 1, %s15
    $region7: #{tpu_custom_call.1} parent=1 // loop_footer_branch
      %14 = sbr.rel target = $region3
    $region8: #{tpu_custom_call.1} parent=1 // loop_exit
      _
    %480 = vsyncpa [#allocation4], 1
    %s481 = scalar_lea.sflag [#allocation4], 1
    %482 = vsyncpa %s481, 1
    %483 = vsyncpa [#allocation5], 1
    %s484 = scalar_lea.sflag [#allocation5], 1
    %485 = vsyncpa %s484, 1

</llo_original>
